<compile_context>
chip_gen: v6e
topology: v6e:2x2x1
jax: 0.10.0
libtpu: 0.0.40
codegen_flags: <defaults>
</compile_context>

<pallas_src>
import functools

import jax
import jax.numpy as jnp
from jax.experimental import pallas as pl
from jax.experimental.pallas import tpu as pltpu


def _round_up(x, m):
    return ((x + m - 1) // m) * m


@functools.lru_cache(maxsize=1)
def _vmem_limit_bytes():
    """Generation-aware VMEM budget: ~75% of physical VMEM.

    ~96 MiB on 128-MiB parts (v5e/v6e), ~48 MiB on the 64-MiB v7x.  Falls back
    to 48 MiB (safe everywhere) if the query is unavailable.
    """
    cap = 64 * 1024 * 1024
    try:
        get_info = getattr(pltpu, "get_tpu_info", None)
        if get_info is not None:
            cap = int(getattr(get_info(), "vmem_capacity_bytes", cap))
    except Exception:
        pass
    return int(cap) * 3 // 4


def readout_kernel(x_ref, w_ref, b_ref, wt_ref, bt_ref, act_ref, time_ref):
    """One (tm, tn) activity tile plus the (tm, 128) lane-padded time tile.

    x_ref   : (tm, Dp)   activation rows (full contraction dim)
    w_ref   : (Dp, tn)   activity weight tile (resident across the inner M axis)
    b_ref   : (1,  tn)   activity bias tile (f32)
    wt_ref  : (Dp, 128)  time-head weight, lane-padded (only column 0 meaningful)
    bt_ref  : (1,  128)  time-head bias, lane-padded (f32)
    act_ref : (tm, tn)   activity output tile
    time_ref: (tm, 128)  time output tile (column 0 meaningful), f32
    """
    x = x_ref[...]
    act = jnp.dot(x, w_ref[...], preferred_element_type=jnp.float32) + b_ref[...]
    act_ref[...] = act.astype(act_ref.dtype)
    # Recomputed on every V tile (cheap: 128 lanes vs tn) so the revisited time
    # output block always carries correct data on every writeback.
    t = jnp.dot(x, wt_ref[...], preferred_element_type=jnp.float32) + bt_ref[...]
    time_ref[...] = t.astype(time_ref.dtype)


def pack_readout_params(w_act, b_act, w_time, b_time, *,
                        compute_dtype=jnp.bfloat16):
    """One-time (outside the hot path) transpose + lane padding of both heads.

    Returns (w_packed (Dp, Va), b_packed (1, Va) f32,
             wt_packed (Dp, 128), bt_packed (1, 128) f32)
    with Va = round_up(vocab, 128) and Dp = D padded to a multiple of 128 only
    when D >= 128 and misaligned (typical d_models are already 128-aligned).
    """
    V, D = w_act.shape
    Dp = D if (D < 128 or D % 128 == 0) else _round_up(D, 128)
    Va = _round_up(V, 128)

    w = jnp.zeros((Dp, Va), dtype=compute_dtype)
    w = w.at[:D, :V].set(w_act.T.astype(compute_dtype))
    b = jnp.zeros((1, Va), dtype=jnp.float32)
    b = b.at[0, :V].set(b_act.astype(jnp.float32))

    wt = jnp.zeros((Dp, 128), dtype=compute_dtype)
    wt = wt.at[:D, 0].set(w_time[0].astype(compute_dtype))
    bt = jnp.zeros((1, 128), dtype=jnp.float32)
    bt = bt.at[0, 0].set(b_time[0].astype(jnp.float32))
    return w, b, wt, bt


def choose_tiles(m_rows, va, dp, *, compute_itemsize, out_itemsize,
                 tm_target=None, tn_target=None, vmem_budget=None):
    """Pick (tm, tn, Mp): big lane-dense tiles that fit the VMEM budget.

    tm divides round_up(M, 8)  -> at most 7 padded x rows.
    tn divides Va               -> activity output needs no column slice.
    """
    if tm_target is None:
        tm_target = 512 if compute_itemsize <= 2 else 256
    if tn_target is None:
        tn_target = 2048 if compute_itemsize <= 2 else 1024
    if vmem_budget is None:
        vmem_budget = _vmem_limit_bytes()

    m8 = _round_up(max(m_rows, 1), 8)

    def pick_tm(target):
        tm = max(8, min(target, m8))
        tm -= tm % 8
        while m8 % tm:
            tm -= 8
        return tm

    def pick_tn(target):
        target = max(128, target)
        if va <= target:
            return va
        tn = (target // 128) * 128
        while va % tn:
            tn -= 128
        return max(tn, 128)

    tm_t, tn_t = tm_target, tn_target
    while True:
        tm, tn = pick_tm(tm_t), pick_tn(tn_t)
        # double-buffered footprint of all operands / outputs
        foot = 2 * (tm * dp * compute_itemsize        # x tile
                    + dp * tn * compute_itemsize      # activity weight tile
                    + tm * tn * out_itemsize          # activity out tile
                    + tm * 128 * 4                    # time out tile
                    + dp * 128 * compute_itemsize     # time weight (resident)
                    + tn * 4 + 128 * 4)               # biases
        if foot <= vmem_budget or (tm <= 8 and tn <= 128):
            return tm, tn, m8
        if tn > 128:
            tn_t = max(128, tn_t // 2)
        else:
            tm_t = max(8, tm_t // 2)


@functools.partial(
    jax.jit,
    static_argnames=("vocab_size", "tm_target", "tn_target", "out_dtype"))
def readout_forward(x, w_packed, b_packed, wt_packed, bt_packed, *,
                    vocab_size, tm_target=None, tn_target=None,
                    out_dtype=jnp.float32):
    """x: (B, S, D). Returns (activity (B,S,V) out_dtype, time (B,S,1) f32)."""
    B, S, D = x.shape
    M = B * S
    Dp, Va = w_packed.shape
    compute_dtype = w_packed.dtype
    bx = jnp.dtype(compute_dtype).itemsize
    bo = jnp.dtype(out_dtype).itemsize

    tm, tn, Mp = choose_tiles(M, Va, Dp, compute_itemsize=bx, out_itemsize=bo,
                              tm_target=tm_target, tn_target=tn_target)

    x2d = x.reshape(M, D).astype(compute_dtype)
    if Dp != D:   # only when d_model >= 128 and not 128-aligned (rare)
        x2d = jnp.pad(x2d, ((0, 0), (0, Dp - D)))
    if Mp != M:   # at most 7 rows (tm divides round_up(M, 8))
        x2d = jnp.pad(x2d, ((0, Mp - M), (0, 0)))

    vt, mt = Va // tn, Mp // tm
    grid = (vt, mt)   # V outer, M inner -> each weight tile DMA'd from HBM once

    cost = pl.CostEstimate(
        flops=2 * Mp * (Va + 128) * Dp,
        transcendentals=0,
        bytes_accessed=(Mp * Dp * bx * vt          # x streamed once per V tile
                        + Dp * Va * bx             # activity weights
                        + Dp * 128 * bx            # time weights
                        + Mp * Va * bo             # activity output
                        + Mp * 128 * 4 * vt        # time output writebacks
                        + Va * 4 + 128 * 4))       # biases

    act_out, time_out = pl.pallas_call(
        readout_kernel,
        out_shape=(jax.ShapeDtypeStruct((Mp, Va), out_dtype),
                   jax.ShapeDtypeStruct((Mp, 128), jnp.float32)),
        grid=grid,
        in_specs=[
            pl.BlockSpec((tm, Dp), lambda j, i: (i, 0)),    # x streams over M
            pl.BlockSpec((Dp, tn), lambda j, i: (0, j)),    # weight resident over M
            pl.BlockSpec((1, tn), lambda j, i: (0, j)),     # bias resident over M
            pl.BlockSpec((Dp, 128), lambda j, i: (0, 0)),   # time weight resident
            pl.BlockSpec((1, 128), lambda j, i: (0, 0)),    # time bias resident
        ],
        out_specs=(
            pl.BlockSpec((tm, tn), lambda j, i: (i, j)),
            pl.BlockSpec((tm, 128), lambda j, i: (i, 0)),
        ),
        compiler_params=pltpu.CompilerParams(
            # V axis revisits the time-output block -> "arbitrary"; M axis is
            # independent -> "parallel" (megacore shards over tokens).
            dimension_semantics=("arbitrary", "parallel"),
            vmem_limit_bytes=_vmem_limit_bytes(),
        ),
        cost_estimate=cost,
    )(x2d, w_packed, b_packed, wt_packed, bt_packed)

    # Slices below are no-ops when M and vocab_size are tile-aligned (the
    # common production case); keep the padded slab downstream to avoid the
    # copy entirely for unaligned vocab sizes.
    if Mp == M and Va == vocab_size:
        activity = act_out.reshape(B, S, vocab_size)
    else:
        activity = act_out[:M, :vocab_size].reshape(B, S, vocab_size)
    time_attr = time_out[:M, :1].reshape(B, S, 1)
    # TODO(synk): nonzero-p train-mode dropout would need pltpu.prng_seed /
    # pltpu.prng_random_bits inside the kernel; p=0.0 makes it the identity.
    return activity, time_attr


if __name__ == "__main__":
    # Small shapes consistent with the module: x is (batch, seq, d_model).
    batch, seq, d_model, vocab_size = 2, 8, 32, 300

    key = jax.random.PRNGKey(0)
    kx, k1, k2, k3, k4 = jax.random.split(key, 5)
    bound = 1.0 / (d_model ** 0.5)
    x = jax.random.normal(kx, (batch, seq, d_model), dtype=jnp.float32)
    w_act = jax.random.uniform(k1, (vocab_size, d_model), jnp.float32,
                               minval=-bound, maxval=bound)
    b_act = jax.random.uniform(k2, (vocab_size,), jnp.float32,
                               minval=-bound, maxval=bound)
    w_time = jax.random.uniform(k3, (1, d_model), jnp.float32,
                                minval=-bound, maxval=bound)
    b_time = jax.random.uniform(k4, (1,), jnp.float32,
                                minval=-bound, maxval=bound)

    # Pure-JAX reference.
    ref_act = x @ w_act.T + b_act
    ref_time = x @ w_time.T + b_time

    # 1) Exact f32 path (matches the PyTorch module bit-for-bit up to MXU f32).
    w32, b32, wt32, bt32 = pack_readout_params(
        w_act, b_act, w_time, b_time, compute_dtype=jnp.float32)
    act32, t32 = readout_forward(x, w32, b32, wt32, bt32,
                                 vocab_size=vocab_size)
    jax.block_until_ready((act32, t32))
    assert act32.shape == (batch, seq, vocab_size)
    assert t32.shape == (batch, seq, 1)
    assert jnp.allclose(act32, ref_act, atol=1e-4, rtol=1e-4)
    assert jnp.allclose(t32, ref_time, atol=1e-4, rtol=1e-4)

    # 2) Default production path: bf16 inputs/weights, f32 accumulation.
    #    Small documented numeric deviation vs the f32 reference.
    wbf, bbf, wtbf, btbf = pack_readout_params(w_act, b_act, w_time, b_time)
    actbf, tbf = readout_forward(x, wbf, bbf, wtbf, btbf,
                                 vocab_size=vocab_size)
    jax.block_until_ready((actbf, tbf))
    assert jnp.allclose(actbf, ref_act, atol=2e-2, rtol=2e-2)
    assert jnp.allclose(tbf, ref_time, atol=2e-2, rtol=2e-2)

    # 3) Force tiny tiles so the grid is genuinely multi-tile (3 x 2) and the
    #    padding / slicing / revisited-time-block paths are exercised.
    act_s, t_s = readout_forward(x, w32, b32, wt32, bt32,
                                 vocab_size=vocab_size,
                                 tm_target=8, tn_target=128)
    jax.block_until_ready((act_s, t_s))
    assert jnp.allclose(act_s, ref_act, atol=1e-4, rtol=1e-4)
    assert jnp.allclose(t_s, ref_time, atol=1e-4, rtol=1e-4)

    print("KERNEL_OK")
</pallas_src>

<mosaic_0001>
module attributes {stable_mosaic.version = 11 : i64} {
  func.func @readout_kernel(%arg0: i32, %arg1: i32, %arg2: memref<16x32xf32, #tpu.memory_space<vmem>>, %arg3: memref<32x384xf32, #tpu.memory_space<vmem>>, %arg4: memref<1x384xf32, #tpu.memory_space<vmem>>, %arg5: memref<32x128xf32, #tpu.memory_space<vmem>>, %arg6: memref<1x128xf32, #tpu.memory_space<vmem>>, %arg7: memref<16x384xf32, #tpu.memory_space<vmem>>, %arg8: memref<16x128xf32, #tpu.memory_space<vmem>>) attributes {dimension_semantics = [#tpu.dimension_semantics<arbitrary>, #tpu.dimension_semantics<parallel>], iteration_bounds = array<i64: 1, 1>, scalar_prefetch = 0 : i64, scratch_operands = 0 : i64, tpu.core_type = #tpu.core_type<tc>, window_params = [{transform_indices = @transform_0, window_bounds = array<i64: 16, 32>}, {transform_indices = @transform_1, window_bounds = array<i64: 32, 384>}, {transform_indices = @transform_2, window_bounds = array<i64: 1, 384>}, {pipeline_mode = #tpu.pipeline_mode<synchronous>, transform_indices = @transform_3, window_bounds = array<i64: 32, 128>}, {pipeline_mode = #tpu.pipeline_mode<synchronous>, transform_indices = @transform_4, window_bounds = array<i64: 1, 128>}, {transform_indices = @transform_5, window_bounds = array<i64: 16, 384>}, {transform_indices = @transform_6, window_bounds = array<i64: 16, 128>}]} {
    %c0 = arith.constant 0 : index
    %c0_0 = arith.constant 0 : index
    %0 = vector.load %arg2[%c0, %c0_0] : memref<16x32xf32, #tpu.memory_space<vmem>>, vector<16x32xf32>
    %c0_1 = arith.constant 0 : index
    %c0_2 = arith.constant 0 : index
    %1 = vector.load %arg3[%c0_1, %c0_2] : memref<32x384xf32, #tpu.memory_space<vmem>>, vector<32x384xf32>
    %cst = arith.constant dense<0.000000e+00> : vector<16x384xf32>
    %2 = tpu.matmul %0, %1, %cst {dimension_numbers = #tpu.dot_dimension_numbers<[1], [0], [0], [1], [0, 0, 1, 1], [], []>} : vector<16x32xf32>, vector<32x384xf32>, vector<16x384xf32> -> vector<16x384xf32>
    %c0_3 = arith.constant 0 : index
    %c0_4 = arith.constant 0 : index
    %3 = vector.load %arg4[%c0_3, %c0_4] : memref<1x384xf32, #tpu.memory_space<vmem>>, vector<1x384xf32>
    %4 = vector.broadcast %3 : vector<1x384xf32> to vector<16x384xf32>
    %5 = arith.addf %2, %4 : vector<16x384xf32>
    %c0_5 = arith.constant 0 : index
    %c0_6 = arith.constant 0 : index
    %6 = vector.load %arg7[%c0_5, %c0_6] : memref<16x384xf32, #tpu.memory_space<vmem>>, vector<16x384xf32>
    tpu.vector_store %arg7[%c0_5, %c0_6], %5 {strides = array<i32>} : memref<16x384xf32, #tpu.memory_space<vmem>>, vector<16x384xf32>,
    %c0_7 = arith.constant 0 : index
    %c0_8 = arith.constant 0 : index
    %7 = vector.load %arg5[%c0_7, %c0_8] : memref<32x128xf32, #tpu.memory_space<vmem>>, vector<32x128xf32>
    %cst_9 = arith.constant dense<0.000000e+00> : vector<16x128xf32>
    %8 = tpu.matmul %0, %7, %cst_9 {dimension_numbers = #tpu.dot_dimension_numbers<[1], [0], [0], [1], [0, 0, 1, 1], [], []>} : vector<16x32xf32>, vector<32x128xf32>, vector<16x128xf32> -> vector<16x128xf32>
    %c0_10 = arith.constant 0 : index
    %c0_11 = arith.constant 0 : index
    %9 = vector.load %arg6[%c0_10, %c0_11] : memref<1x128xf32, #tpu.memory_space<vmem>>, vector<1x128xf32>
    %10 = vector.broadcast %9 : vector<1x128xf32> to vector<16x128xf32>
    %11 = arith.addf %8, %10 : vector<16x128xf32>
    %c0_12 = arith.constant 0 : index
    %c0_13 = arith.constant 0 : index
    %12 = vector.load %arg8[%c0_12, %c0_13] : memref<16x128xf32, #tpu.memory_space<vmem>>, vector<16x128xf32>
    tpu.vector_store %arg8[%c0_12, %c0_13], %11 {strides = array<i32>} : memref<16x128xf32, #tpu.memory_space<vmem>>, vector<16x128xf32>,
    return
  }
  func.func @transform_0(%arg0: i32, %arg1: i32) -> (i32, i32) {
    %c0_i32 = arith.constant 0 : i32
    %c0_i32_0 = arith.constant 0 : i32
    return %arg1, %c0_i32 : i32, i32
  }
  func.func @transform_1(%arg0: i32, %arg1: i32) -> (i32, i32) {
    %c0_i32 = arith.constant 0 : i32
    %c0_i32_0 = arith.constant 0 : i32
    return %c0_i32, %arg0 : i32, i32
  }
  func.func @transform_2(%arg0: i32, %arg1: i32) -> (i32, i32) {
    %c0_i32 = arith.constant 0 : i32
    %c0_i32_0 = arith.constant 0 : i32
    return %c0_i32, %arg0 : i32, i32
  }
  func.func @transform_3(%arg0: i32, %arg1: i32) -> (i32, i32) {
    %c0_i32 = arith.constant 0 : i32
    %c0_i32_0 = arith.constant 0 : i32
    %c0_i32_1 = arith.constant 0 : i32
    return %c0_i32, %c0_i32_0 : i32, i32
  }
  func.func @transform_4(%arg0: i32, %arg1: i32) -> (i32, i32) {
    %c0_i32 = arith.constant 0 : i32
    %c0_i32_0 = arith.constant 0 : i32
    %c0_i32_1 = arith.constant 0 : i32
    return %c0_i32, %c0_i32_0 : i32, i32
  }
  func.func @transform_5(%arg0: i32, %arg1: i32) -> (i32, i32) {
    %c0_i32 = arith.constant 0 : i32
    return %arg1, %arg0 : i32, i32
  }
  func.func @transform_6(%arg0: i32, %arg1: i32) -> (i32, i32) {
    %c0_i32 = arith.constant 0 : i32
    %c0_i32_0 = arith.constant 0 : i32
    return %arg1, %c0_i32 : i32, i32
  }
}

</mosaic_0001>

<llo_original>
// kernel: readout_forward.1
$region0: #{readout_forward.1}
  #allocation0 [shape = 'u32[]', space=smem, size = 0x4, offset = 0x4, fixed_abs, tag = 'smem constant byte address 0x4 - core index']
  #allocation1 [shape = 'u32[144,128]{1,0:T(1,128)}', space=vmem, size = 0x12000, scoped, tag = 'internal scratch']
  %s0 = inlined_call_operand.hbm [shape: f32[16,32], index: 0, kind: input, shape index: {}]
  %s1 = inlined_call_operand.hbm [shape: f32[32,384], index: 1, kind: input, shape index: {}]
  %s2 = inlined_call_operand.vmem [shape: f32[1,384], index: 2, kind: input, shape index: {}]
  %s3 = inlined_call_operand.hbm [shape: f32[32,128], index: 3, kind: input, shape index: {}]
  %s4 = inlined_call_operand.vmem [shape: f32[1,128], index: 4, kind: input, shape index: {}]
  %s5 = inlined_call_operand.vmem [shape: f32[16,384], index: 5, kind: output, shape index: {0}]
  %s6 = inlined_call_operand.vmem [shape: f32[16,128], index: 6, kind: output, shape index: {1}]
  %7 = xla_tuple %s5, %s6
  %s8 = sld [smem:[#allocation0]]
  $region50: #{readout_forward.1} parent=0
    _
  %s10 = ssub.s32 1, %s8
  %s11 = scalar_select 0, %s10, %s8
  $region1: #{readout_forward.1} parent=0
    #allocation2 [shape = 'u8[8192]{0}', space=vmem, size = 0x2000, scoped, tag = 'input window, operand 0, single buffered']
    #allocation3 [shape = 's32[1]{0}', space=sflag, size = 0x4, scoped, tag = 'scoped memory for readout_forward.1']
    #allocation4 [shape = 'u8[49152]{0}', space=vmem, size = 0xc000, scoped, tag = 'input window, operand 1, single buffered']
    #allocation5 [shape = 's32[1]{0}', space=sflag, size = 0x4, scoped, tag = 'scoped memory for readout_forward.1']
    #allocation6 [shape = 'u8[16384]{0}', space=vmem, size = 0x4000, scoped, tag = 'input window, operand 3, single buffered']
    %12 = vsyncpa [#allocation3], 0
    %13 = vsyncpa [#allocation5], 0
    // Predicated region
    $region2: #{readout_forward.1} parent=1 // pred_check
      _
    $region3: #{readout_forward.1} parent=1 // pred_check_branch
      %15 = sbr.rel (0) target = $region5
    $region4: #{readout_forward.1} parent=1 // pred_region
      %s17 = ssub.s32 256, 256
      %18 = vsyncadd [#allocation3], %s17
      %s19 = sshll.u32 [#allocation2], 4
      %s20 = int_to_ptr.vmem [resolvable:$true] %s19
      %25 = dma.hbm_to_vmem [thread:$0]  %s0, 256, %s20, [#allocation3], 128, 128, 8
    $region5: #{readout_forward.1} parent=1 // pred_fallthru
      _
    // Predicated region
    $region6: #{readout_forward.1} parent=1 // pred_check
      _
    $region7: #{readout_forward.1} parent=1 // pred_check_branch
      %27 = sbr.rel (0) target = $region9
    $region8: #{readout_forward.1} parent=1 // pred_region
      %s29 = ssub.s32 1536, 1536
      %30 = vsyncadd [#allocation5], %s29
      %s31 = sshll.u32 [#allocation4], 4
      %s32 = int_to_ptr.vmem [resolvable:$true] %s31
      %37 = dma.hbm_to_vmem [thread:$0]  %s1, 1536, %s32, [#allocation5], 384, 384, 24
    $region9: #{readout_forward.1} parent=1 // pred_fallthru
      _
    // Predicated region
    $region10: #{readout_forward.1} parent=1 // pred_check
      _
    $region11: #{readout_forward.1} parent=1 // pred_check_branch
      %39 = sbr.rel (0) target = $region13
    $region12: #{readout_forward.1} parent=1 // pred_region
      _
    $region13: #{readout_forward.1} parent=1 // pred_fallthru
      _
    // Predicated region
    $region14: #{readout_forward.1} parent=1 // pred_check
      _
    $region15: #{readout_forward.1} parent=1 // pred_check_branch
      %41 = sbr.rel (0) target = $region17
    $region16: #{readout_forward.1} parent=1 // pred_region
      %s43 = ssub.s32 512, 512
      %44 = vsyncadd [#allocation5], %s43
      %s45 = sshll.u32 [#allocation6], 4
      %s46 = int_to_ptr.vmem [resolvable:$true] %s45
      %51 = dma.hbm_to_vmem [thread:$0]  %s3, 512, %s46, [#allocation5], 128, 128, 8
    $region17: #{readout_forward.1} parent=1 // pred_fallthru
      _
    // Predicated region
    $region18: #{readout_forward.1} parent=1 // pred_check
      _
    $region19: #{readout_forward.1} parent=1 // pred_check_branch
      %53 = sbr.rel (0) target = $region21
    $region20: #{readout_forward.1} parent=1 // pred_region
      _
    $region21: #{readout_forward.1} parent=1 // pred_fallthru
      _
    // Predicated region
    $region22: #{readout_forward.1} parent=1 // pred_check
      _
    $region23: #{readout_forward.1} parent=1 // pred_check_branch
      %55 = sbr.rel (0) target = $region25
    $region24: #{readout_forward.1} parent=1 // pred_region
      %56 = dma.done [#allocation3], 256
    $region25: #{readout_forward.1} parent=1 // pred_fallthru
      _
    // Predicated region
    $region26: #{readout_forward.1} parent=1 // pred_check
      _
    $region27: #{readout_forward.1} parent=1 // pred_check_branch
      %58 = sbr.rel (0) target = $region29
    $region28: #{readout_forward.1} parent=1 // pred_region
      %59 = dma.done [#allocation5], 1536
    $region29: #{readout_forward.1} parent=1 // pred_fallthru
      _
    // Predicated region
    $region30: #{readout_forward.1} parent=1 // pred_check
      _
    $region31: #{readout_forward.1} parent=1 // pred_check_branch
      %61 = sbr.rel (0) target = $region33
    $region32: #{readout_forward.1} parent=1 // pred_region
      %62 = dma.done [#allocation5], 512
    $region33: #{readout_forward.1} parent=1 // pred_fallthru
      _
    %v63 = vld [vmem:[#allocation2] sm:$0xff]
    %v64 = vld [vmem:[#allocation2 + $0x8] sm:$0xff]
    %v65 = vld [vmem:[#allocation4] sm:$0xff]
    %v66 = vld [vmem:[#allocation4 + $0x8] sm:$0xff]
    %v67 = vld [vmem:[#allocation4 + $0x10] sm:$0xff]
    %v68 = vld [vmem:[#allocation4 + $0x18] sm:$0xff]
    %v69 = vld [vmem:[#allocation4 + $0x20] sm:$0xff]
    %v70 = vld [vmem:[#allocation4 + $0x28] sm:$0xff]
    %v71 = vld [vmem:[#allocation4 + $0x30] sm:$0xff]
    %v72 = vld [vmem:[#allocation4 + $0x38] sm:$0xff]
    %v73 = vld [vmem:[#allocation4 + $0x40] sm:$0xff]
    %v74 = vld [vmem:[#allocation4 + $0x48] sm:$0xff]
    %v75 = vld [vmem:[#allocation4 + $0x50] sm:$0xff]
    %v76 = vld [vmem:[#allocation4 + $0x58] sm:$0xff]
    %v77 = vld [vmem:[%s2] sm:$0x7]
    %v79 = vlaneseq
    %v80 = vshrl.u32 %v79, 7
    %v81 = vsub.s32 0, %v80
    %v82 = vrot.slane %v77, %v81
    %v83 = vlaneseq
    %v84 = vshrl.u32 %v83, 7
    %v85 = vsub.s32 1, %v84
    %v86 = vrot.slane %v77, %v85
    %v87 = vlaneseq
    %v88 = vshrl.u32 %v87, 7
    %v89 = vsub.s32 2, %v88
    %v90 = vrot.slane %v77, %v89
    %vm94 = vcmask 261120
    %v96 = vsel %vm94, %v63, 0
    %v99 = vsel %vm94, %v64, 0
    %101 = vmatprep.subr.mxu0 0.0
    %102 = vmatpush1.msra.mxu0 0.0
    %103 = vmatprep.subr.mxu0 0.0
    %104 = vmatpush1.msra.mxu0 0.0
    %105 = vmatprep.subr.mxu0 0.0
    %106 = vmatpush1.msra.mxu0 0.0
    %107 = vmatprep.subr.mxu0 0.0
    %108 = vmatpush1.msra.mxu0 0.0
    %109 = vmatprep.subr.mxu0 0.0
    %110 = vmatpush1.msra.mxu0 0.0
    %111 = vmatprep.subr.mxu0 0.0
    %112 = vmatpush1.msra.mxu0 0.0
    %113 = vmatprep.subr.mxu0 0.0
    %114 = vmatpush1.msra.mxu0 0.0
    %115 = vmatprep.subr.mxu0 0.0
    %116 = vmatpush1.msra.mxu0 0.0
    %117 = vmatprep.subr.mxu0 0.0
    %118 = vmatpush1.msra.mxu0 0.0
    %119 = vmatprep.subr.mxu0 0.0
    %120 = vmatpush1.msra.mxu0 0.0
    %121 = vmatprep.subr.mxu0 0.0
    %122 = vmatpush1.msra.mxu0 0.0
    %123 = vmatprep.subr.mxu0 0.0
    %124 = vmatpush1.msra.mxu0 0.0
    %125 = vmatprep.subr.mxu0 %v75
    %126 = vmatpush1.msra.mxu0 %v74
    %127 = vmatprep.subr.mxu0 %v72
    %128 = vmatpush1.msra.mxu0 %v71
    %129 = vmatprep.subr.mxu0 %v69
    %130 = vmatpush1.msra.mxu0 %v68
    %131 = vmatprep.subr.mxu0 %v66
    %132 = vmatpush1.msra.mxu0 %v65
    %133 = vmatprep.subr.mxu0 0.0
    %134 = vmatpush2.msra.mxu0 0.0
    %135 = vmatprep.subr.mxu0 0.0
    %136 = vmatpush2.msra.mxu0 0.0
    %137 = vmatprep.subr.mxu0 0.0
    %138 = vmatpush2.msra.mxu0 0.0
    %139 = vmatprep.subr.mxu0 0.0
    %140 = vmatpush2.msra.mxu0 0.0
    %141 = vmatprep.subr.mxu0 0.0
    %142 = vmatpush2.msra.mxu0 0.0
    %143 = vmatprep.subr.mxu0 0.0
    %144 = vmatpush2.msra.mxu0 0.0
    %145 = vmatprep.subr.mxu0 0.0
    %146 = vmatpush2.msra.mxu0 0.0
    %147 = vmatprep.subr.mxu0 0.0
    %148 = vmatpush2.msra.mxu0 0.0
    %149 = vmatprep.subr.mxu0 0.0
    %150 = vmatpush2.msra.mxu0 0.0
    %151 = vmatprep.subr.mxu0 0.0
    %152 = vmatpush2.msra.mxu0 0.0
    %153 = vmatprep.subr.mxu0 0.0
    %154 = vmatpush2.msra.mxu0 0.0
    %155 = vmatprep.subr.mxu0 0.0
    %156 = vmatpush2.msra.mxu0 0.0
    %157 = vmatprep.subr.mxu0 0.0
    %158 = vmatpush2.msra.mxu0 0.0
    %159 = vmatprep.subr.mxu0 0.0
    %160 = vmatpush2.msra.mxu0 0.0
    %161 = vmatprep.subr.mxu0 0.0
    %162 = vmatpush2.msra.mxu0 0.0
    %163 = vmatprep.subr.mxu0 0.0
    %164 = vmatpush2.msra.mxu0 0.0
    %165 = vmatprep.mubr.f32.mxu0 0.0
    %166 = vmatmul.mubr.f32.gmra.mxu0 %v96
    %v167 = vpop.f32.mrf.mxu0
    %v168 = vadd.f32 %v82, %v167
    %v169 = vpop.f32.mrf.mxu0
    %v170 = vadd.f32 %v86, %v169
    %171 = vmatprep.mubr.f32.mxu0 0.0
    %172 = vmatmul.mubr.f32.gmra.mxu0 %v99
    %v173 = vpop.f32.mrf.mxu0
    %v174 = vadd.f32 %v82, %v173
    %v175 = vpop.f32.mrf.mxu0
    %v176 = vadd.f32 %v86, %v175
    %177 = vdwg.mxu0
    %178 = vmatprep.subr.mxu0 0.0
    %179 = vmatpush1.msra.mxu0 0.0
    %180 = vmatprep.subr.mxu0 0.0
    %181 = vmatpush1.msra.mxu0 0.0
    %182 = vmatprep.subr.mxu0 0.0
    %183 = vmatpush1.msra.mxu0 0.0
    %184 = vmatprep.subr.mxu0 0.0
    %185 = vmatpush1.msra.mxu0 0.0
    %186 = vmatprep.subr.mxu0 0.0
    %187 = vmatpush1.msra.mxu0 0.0
    %188 = vmatprep.subr.mxu0 0.0
    %189 = vmatpush1.msra.mxu0 0.0
    %190 = vmatprep.subr.mxu0 0.0
    %191 = vmatpush1.msra.mxu0 0.0
    %192 = vmatprep.subr.mxu0 0.0
    %193 = vmatpush1.msra.mxu0 0.0
    %194 = vmatprep.subr.mxu0 0.0
    %195 = vmatpush1.msra.mxu0 0.0
    %196 = vmatprep.subr.mxu0 0.0
    %197 = vmatpush1.msra.mxu0 0.0
    %198 = vmatprep.subr.mxu0 0.0
    %199 = vmatpush1.msra.mxu0 0.0
    %200 = vmatprep.subr.mxu0 0.0
    %201 = vmatpush1.msra.mxu0 0.0
    %202 = vmatprep.subr.mxu0 0.0
    %203 = vmatpush1.msra.mxu0 %v76
    %204 = vmatprep.subr.mxu0 0.0
    %205 = vmatpush1.msra.mxu0 %v73
    %206 = vmatprep.subr.mxu0 0.0
    %207 = vmatpush1.msra.mxu0 %v70
    %208 = vmatprep.subr.mxu0 0.0
    %209 = vmatpush1.msra.mxu0 %v67
    %210 = vmatprep.subr.mxu0 0.0
    %211 = vmatpush2.msra.mxu0 0.0
    %212 = vmatprep.subr.mxu0 0.0
    %213 = vmatpush2.msra.mxu0 0.0
    %214 = vmatprep.subr.mxu0 0.0
    %215 = vmatpush2.msra.mxu0 0.0
    %216 = vmatprep.subr.mxu0 0.0
    %217 = vmatpush2.msra.mxu0 0.0
    %218 = vmatprep.subr.mxu0 0.0
    %219 = vmatpush2.msra.mxu0 0.0
    %220 = vmatprep.subr.mxu0 0.0
    %221 = vmatpush2.msra.mxu0 0.0
    %222 = vmatprep.subr.mxu0 0.0
    %223 = vmatpush2.msra.mxu0 0.0
    %224 = vmatprep.subr.mxu0 0.0
    %225 = vmatpush2.msra.mxu0 0.0
    %226 = vmatprep.subr.mxu0 0.0
    %227 = vmatpush2.msra.mxu0 0.0
    %228 = vmatprep.subr.mxu0 0.0
    %229 = vmatpush2.msra.mxu0 0.0
    %230 = vmatprep.subr.mxu0 0.0
    %231 = vmatpush2.msra.mxu0 0.0
    %232 = vmatprep.subr.mxu0 0.0
    %233 = vmatpush2.msra.mxu0 0.0
    %234 = vmatprep.subr.mxu0 0.0
    %235 = vmatpush2.msra.mxu0 0.0
    %236 = vmatprep.subr.mxu0 0.0
    %237 = vmatpush2.msra.mxu0 0.0
    %238 = vmatprep.subr.mxu0 0.0
    %239 = vmatpush2.msra.mxu0 0.0
    %240 = vmatprep.subr.mxu0 0.0
    %241 = vmatpush2.msra.mxu0 0.0
    %242 = vmatprep.mubr.f32.mxu0 0.0
    %243 = vmatmul.mubr.f32.gmra.mxu0 %v96
    %v244 = vpop.f32.mrf.mxu0
    %v245 = vadd.f32 %v90, %v244
    %v246 = vpop.f32.mrf.mxu0
    %247 = vmatprep.mubr.f32.mxu0 0.0
    %248 = vmatmul.mubr.f32.gmra.mxu0 %v99
    %v249 = vpop.f32.mrf.mxu0
    %v250 = vadd.f32 %v90, %v249
    %v251 = vpop.f32.mrf.mxu0
    %252 = vdwg.mxu0
    %253 = vst [vmem:[%s5] sm:$0xff] %v168
    %254 = vst [vmem:[%s5 + $0x8] sm:$0xff] %v170
    %255 = vst [vmem:[%s5 + $0x10] sm:$0xff] %v245
    %256 = vst [vmem:[%s5 + $0x18] sm:$0xff] %v174
    %257 = vst [vmem:[%s5 + $0x20] sm:$0xff] %v176
    %258 = vst [vmem:[%s5 + $0x28] sm:$0xff] %v250
    %v259 = vld [vmem:[#allocation6] sm:$0xff]
    %v260 = vld [vmem:[#allocation6 + $0x8] sm:$0xff]
    %v261 = vld [vmem:[#allocation6 + $0x10] sm:$0xff]
    %v262 = vld [vmem:[#allocation6 + $0x18] sm:$0xff]
    %v263 = vld [vmem:[%s4] sm:$0x1]
    %v265 = vlaneseq
    %v266 = vshrl.u32 %v265, 7
    %v267 = vsub.s32 0, %v266
    %v268 = vrot.slane %v263, %v267
    %270 = vmatprep.subr.mxu0 0.0
    %271 = vmatpush1.msra.mxu0 0.0
    %272 = vmatprep.subr.mxu0 0.0
    %273 = vmatpush1.msra.mxu0 0.0
    %274 = vmatprep.subr.mxu0 0.0
    %275 = vmatpush1.msra.mxu0 0.0
    %276 = vmatprep.subr.mxu0 0.0
    %277 = vmatpush1.msra.mxu0 0.0
    %278 = vmatprep.subr.mxu0 0.0
    %279 = vmatpush1.msra.mxu0 0.0
    %280 = vmatprep.subr.mxu0 0.0
    %281 = vmatpush1.msra.mxu0 0.0
    %282 = vmatprep.subr.mxu0 0.0
    %283 = vmatpush1.msra.mxu0 0.0
    %284 = vmatprep.subr.mxu0 0.0
    %285 = vmatpush1.msra.mxu0 0.0
    %286 = vmatprep.subr.mxu0 0.0
    %287 = vmatpush1.msra.mxu0 0.0
    %288 = vmatprep.subr.mxu0 0.0
    %289 = vmatpush1.msra.mxu0 0.0
    %290 = vmatprep.subr.mxu0 0.0
    %291 = vmatpush1.msra.mxu0 0.0
    %292 = vmatprep.subr.mxu0 0.0
    %293 = vmatpush1.msra.mxu0 0.0
    %294 = vmatprep.subr.mxu0 0.0
    %295 = vmatpush1.msra.mxu0 %v262
    %296 = vmatprep.subr.mxu0 0.0
    %297 = vmatpush1.msra.mxu0 %v261
    %298 = vmatprep.subr.mxu0 0.0
    %299 = vmatpush1.msra.mxu0 %v260
    %300 = vmatprep.subr.mxu0 0.0
    %301 = vmatpush1.msra.mxu0 %v259
    %302 = vmatprep.subr.mxu0 0.0
    %303 = vmatpush2.msra.mxu0 0.0
    %304 = vmatprep.subr.mxu0 0.0
    %305 = vmatpush2.msra.mxu0 0.0
    %306 = vmatprep.subr.mxu0 0.0
    %307 = vmatpush2.msra.mxu0 0.0
    %308 = vmatprep.subr.mxu0 0.0
    %309 = vmatpush2.msra.mxu0 0.0
    %310 = vmatprep.subr.mxu0 0.0
    %311 = vmatpush2.msra.mxu0 0.0
    %312 = vmatprep.subr.mxu0 0.0
    %313 = vmatpush2.msra.mxu0 0.0
    %314 = vmatprep.subr.mxu0 0.0
    %315 = vmatpush2.msra.mxu0 0.0
    %316 = vmatprep.subr.mxu0 0.0
    %317 = vmatpush2.msra.mxu0 0.0
    %318 = vmatprep.subr.mxu0 0.0
    %319 = vmatpush2.msra.mxu0 0.0
    %320 = vmatprep.subr.mxu0 0.0
    %321 = vmatpush2.msra.mxu0 0.0
    %322 = vmatprep.subr.mxu0 0.0
    %323 = vmatpush2.msra.mxu0 0.0
    %324 = vmatprep.subr.mxu0 0.0
    %325 = vmatpush2.msra.mxu0 0.0
    %326 = vmatprep.subr.mxu0 0.0
    %327 = vmatpush2.msra.mxu0 0.0
    %328 = vmatprep.subr.mxu0 0.0
    %329 = vmatpush2.msra.mxu0 0.0
    %330 = vmatprep.subr.mxu0 0.0
    %331 = vmatpush2.msra.mxu0 0.0
    %332 = vmatprep.subr.mxu0 0.0
    %333 = vmatpush2.msra.mxu0 0.0
    %334 = vmatprep.mubr.f32.mxu0 0.0
    %335 = vmatmul.mubr.f32.gmra.mxu0 %v96
    %v336 = vpop.f32.mrf.mxu0
    %v337 = vadd.f32 %v268, %v336
    %v338 = vpop.f32.mrf.mxu0
    %339 = vmatprep.mubr.f32.mxu0 0.0
    %340 = vmatmul.mubr.f32.gmra.mxu0 %v99
    %v341 = vpop.f32.mrf.mxu0
    %v342 = vadd.f32 %v268, %v341
    %v343 = vpop.f32.mrf.mxu0
    %344 = vdwg.mxu0
    %345 = vst [vmem:[%s6] sm:$0xff] %v337
    %346 = vst [vmem:[%s6 + $0x8] sm:$0xff] %v342
    // Predicated region
    $region34: #{readout_forward.1} parent=1 // pred_check
      _
    $region35: #{readout_forward.1} parent=1 // pred_check_branch
      %348 = sbr.rel (0) target = $region37
    $region36: #{readout_forward.1} parent=1 // pred_region
      _
    $region37: #{readout_forward.1} parent=1 // pred_fallthru
      _
    // Predicated region
    $region38: #{readout_forward.1} parent=1 // pred_check
      _
    $region39: #{readout_forward.1} parent=1 // pred_check_branch
      %350 = sbr.rel (0) target = $region41
    $region40: #{readout_forward.1} parent=1 // pred_region
      _
    $region41: #{readout_forward.1} parent=1 // pred_fallthru
      _
    // Predicated region
    $region42: #{readout_forward.1} parent=1 // pred_check
      _
    $region43: #{readout_forward.1} parent=1 // pred_check_branch
      %352 = sbr.rel (0) target = $region45
    $region44: #{readout_forward.1} parent=1 // pred_region
      _
    $region45: #{readout_forward.1} parent=1 // pred_fallthru
      _
    // Predicated region
    $region46: #{readout_forward.1} parent=1 // pred_check
      _
    $region47: #{readout_forward.1} parent=1 // pred_check_branch
      %354 = sbr.rel (0) target = $region49
    $region48: #{readout_forward.1} parent=1 // pred_region
      _
    $region49: #{readout_forward.1} parent=1 // pred_fallthru
      _
    %355 = vsyncpa [#allocation3], 1
    %356 = vsyncpa [#allocation5], 1

</llo_original>
